<compile_context>
chip_gen: v5e
topology: v5e:2x2
jax: 0.10.0
libtpu: 0.0.40
codegen_flags: <defaults>
</compile_context>

<pallas_src>
import functools

import jax
import jax.numpy as jnp
from jax.experimental import pallas as pl
from jax.experimental.pallas import tpu as pltpu


# ----------------------------------------------------------------------------
# Fused Pallas kernel: depthwise conv + BN + ReLU + 1x1 conv + BN + maxpool
# ----------------------------------------------------------------------------

def aaron_block_kernel(x_ref, dw_w_ref, dw_b_ref, pw_w_ref, pw_b_ref,
                       o_ref, xp_scr, z_scr, *, ksize, pad, length, l_out, pool):
    # x_ref:    (Bt, L, C_in)            f32  (unpadded NLC input tile)
    # dw_w_ref: (K, C_in)                f32  (BN1 folded into weights)
    # dw_b_ref: (1, C_in)                f32  (conv bias with BN1 folded in)
    # pw_w_ref: (C_in, C_out_pad)        bf16 (BN2 folded, zero-padded to 128 lanes)
    # pw_b_ref: (1, C_out_pad)           f32
    # o_ref:    (Bt*L_pool, C_out_pad)   f32  (flat, lane-dense output slab)
    # xp_scr:   (Bt, L + 2*pad, C_in)    f32  VMEM scratch with zero halo
    # z_scr:    (Bt*L_out, C_out_pad)    f32  VMEM scratch for the pooling step
    bt = x_ref.shape[0]
    c_in = x_ref.shape[-1]
    c_out_pad = o_ref.shape[-1]

    # Stage x into the zero-halo scratch (halo rows written once; no wrapper jnp.pad).
    if pad > 0:
        halo = jnp.zeros((bt, pad, c_in), jnp.float32)
        xp_scr[:, pl.ds(0, pad), :] = halo
        xp_scr[:, pl.ds(pad + length, pad), :] = halo
    xp_scr[:, pl.ds(pad, length), :] = x_ref[...]

    # Depthwise conv (groups == C_in) with folded BN1: ref-sliced taps at static
    # sublane offsets -> pure VPU fmul/fadd, no sublane relayout.
    acc = xp_scr[:, pl.ds(0, l_out), :] * dw_w_ref[pl.ds(0, 1), :]
    for t in range(1, ksize):
        acc = acc + xp_scr[:, pl.ds(t, l_out), :] * dw_w_ref[pl.ds(t, 1), :]
    acc = acc + dw_b_ref[...]

    # QuantReLU (activation fake-quant scale omitted) -> plain ReLU.
    h = jnp.maximum(acc, 0.0)

    # Pointwise 1x1 conv with folded BN2: one tall MXU GEMM over all Bt batch rows,
    # bf16 operands, f32 accumulation.
    h2 = h.reshape(bt * l_out, c_in).astype(jnp.bfloat16)
    z = jnp.dot(h2, pw_w_ref[...], preferred_element_type=jnp.float32)
    z = z + pw_b_ref[...]

    # MaxPool1d(pool): strided sublane reads from VMEM scratch.  l_out % pool == 0, so
    # batches stay separate in the flat (Bt*L_out) layout.
    n = bt * (l_out // pool)
    z_scr[...] = z
    r = z_scr[pl.ds(0, n, stride=pool), :]
    for p in range(1, pool):
        r = jnp.maximum(r, z_scr[pl.ds(p, n, stride=pool), :])
    o_ref[...] = r.astype(o_ref.dtype)


# ----------------------------------------------------------------------------
# Wrappers
# ----------------------------------------------------------------------------

def aaron_block_forward_nlc(x_nlc, params, *, ksize, padding, pool, batch_tile=None):
    """Performance path: NLC input (B, L, C_in) -> NLC output (B, L_pool, 128-padded)."""
    b, length, c_in = x_nlc.shape
    l_out = length + 2 * padding - ksize + 1
    assert l_out % pool == 0, "MaxPool truncation not implemented for this config"
    l_pool = l_out // pool
    c_out_pad = params["pw_w"].shape[1]

    if batch_tile is None:
        # Fold batch per grid step, but keep >=2 grid steps when possible so both
        # v7x TensorCores get work (dimension_semantics=("parallel",)).
        batch_tile = b // 2 if (b > 1 and b % 2 == 0) else 1
    bt = batch_tile
    assert b % bt == 0

    kernel = functools.partial(aaron_block_kernel, ksize=ksize, pad=padding,
                               length=length, l_out=l_out, pool=pool)
    y_flat = pl.pallas_call(
        kernel,
        out_shape=jax.ShapeDtypeStruct((b * l_pool, c_out_pad), jnp.float32),
        grid=(b // bt,),
        in_specs=[
            pl.BlockSpec((bt, length, c_in), lambda i: (i, 0, 0)),
            pl.BlockSpec((ksize, c_in), lambda i: (0, 0)),
            pl.BlockSpec((1, c_in), lambda i: (0, 0)),
            pl.BlockSpec((c_in, c_out_pad), lambda i: (0, 0)),
            pl.BlockSpec((1, c_out_pad), lambda i: (0, 0)),
        ],
        out_specs=pl.BlockSpec((bt * l_pool, c_out_pad), lambda i: (i, 0)),
        scratch_shapes=[
            pltpu.VMEM((bt, length + 2 * padding, c_in), jnp.float32),
            pltpu.VMEM((bt * l_out, c_out_pad), jnp.float32),
        ],
        compiler_params=pltpu.CompilerParams(
            dimension_semantics=("parallel",),
        ),
    )(x_nlc, params["dw_w"], params["dw_b"], params["pw_w"], params["pw_b"])

    # Free metadata reshape back to (B, L_pool, C_out_pad); channels stay lane-padded.
    return y_flat.reshape(b, l_pool, c_out_pad)


def aaron_block_forward_ncl(x_ncl, params, *, ksize, padding, pool, batch_tile=None):
    """PyTorch drop-in (NCL in / NCL out, unpadded channels).

    The transpose / channel-slice here are extra HBM passes; prefer keeping
    activations in NLC with 128-padded channels upstream and calling
    aaron_block_forward_nlc directly.
    """
    y = aaron_block_forward_nlc(jnp.transpose(x_ncl, (0, 2, 1)), params,
                                ksize=ksize, padding=padding, pool=pool,
                                batch_tile=batch_tile)
    return jnp.transpose(y[:, :, : params["c_out"]], (0, 2, 1))


# ----------------------------------------------------------------------------
# Deterministic parameter init (PyTorch weight conventions), BN folding
# ----------------------------------------------------------------------------

def init_params(key, c_in, c_out, ksize):
    ks = jax.random.split(key, 6)

    def nrm(k, shape, fan_in):
        return jax.random.normal(k, shape, jnp.float32) / jnp.sqrt(jnp.float32(fan_in))

    def bn(k, c):
        kg, kb, km, kv = jax.random.split(k, 4)
        gamma = 1.0 + 0.1 * jax.random.normal(kg, (c,), jnp.float32)
        beta = 0.1 * jax.random.normal(kb, (c,), jnp.float32)
        mean = 0.1 * jax.random.normal(km, (c,), jnp.float32)
        var = 1.0 + 0.1 * jax.random.uniform(kv, (c,), jnp.float32)
        s = gamma / jnp.sqrt(var + 1e-5)
        t = beta - mean * s
        return s, t

    # Torch-convention weights.
    dw_w_t = nrm(ks[0], (c_in, 1, ksize), ksize)      # depthwise (C_in, 1, K)
    dw_b = nrm(ks[1], (c_in,), ksize)
    s1, t1 = bn(ks[2], c_in)
    pw_w_t = nrm(ks[3], (c_out, c_in, 1), c_in)       # pointwise (C_out, C_in, 1)
    pw_b = nrm(ks[4], (c_out,), c_in)
    s2, t2 = bn(ks[5], c_out)

    # TODO(synk): brevitas int8 weight fake-quant omitted (float weights used directly).
    #             If/when int8 scales are added, keep the BN2/output scale as an f32
    #             per-channel multiply after the MXU accumulation instead of baking it
    #             into the bf16 operand.

    # Fold BatchNorm into conv weights / biases.
    dw_w = jnp.transpose(dw_w_t[:, 0, :]) * s1[None, :]        # (K, C_in)
    dw_bias = dw_b * s1 + t1
    pw_w = jnp.transpose(pw_w_t[:, :, 0]) * s2[None, :]        # (C_in, C_out)
    pw_bias = pw_b * s2 + t2

    # Pad output channels to a lane-dense multiple of 128 (unmasked stores).
    c_out_pad = ((c_out + 127) // 128) * 128
    pw_w_pad = jnp.zeros((c_in, c_out_pad), jnp.float32).at[:, :c_out].set(pw_w)
    pw_b_pad = jnp.zeros((c_out_pad,), jnp.float32).at[:c_out].set(pw_bias)

    params = dict(
        dw_w=dw_w,                                 # f32 (K, C_in)
        dw_b=dw_bias.reshape(1, c_in),             # f32 (1, C_in)
        pw_w=pw_w_pad.astype(jnp.bfloat16),        # bf16 (C_in, C_out_pad) MXU operand
        pw_b=pw_b_pad.reshape(1, c_out_pad),       # f32 (1, C_out_pad)
        c_out=c_out,
    )
    ref_params = dict(dw_w_t=dw_w_t, dw_b=dw_b, s1=s1, t1=t1,
                      pw_w_t=pw_w_t, pw_b=pw_b, s2=s2, t2=t2)
    return params, ref_params


# ----------------------------------------------------------------------------
# Pure-JAX (XLA) reference for correctness checking (NLC layout)
# ----------------------------------------------------------------------------

def reference_forward_nlc(x_nlc, r, *, ksize, padding, pool):
    xp = jnp.pad(x_nlc.astype(jnp.float32), ((0, 0), (padding, padding), (0, 0)))
    b, length, c_in = x_nlc.shape
    l_out = length + 2 * padding - ksize + 1

    wd = jnp.transpose(r["dw_w_t"][:, 0, :])                   # (K, C_in)
    acc = jnp.zeros((b, l_out, c_in), jnp.float32)
    for t in range(ksize):
        acc = acc + xp[:, t:t + l_out, :] * wd[t][None, None, :]
    acc = (acc + r["dw_b"]) * r["s1"] + r["t1"]
    h = jnp.maximum(acc, 0.0)

    wp = jnp.transpose(r["pw_w_t"][:, :, 0])                   # (C_in, C_out)
    z = jnp.einsum("blc,cd->bld", h, wp) + r["pw_b"]
    z = z * r["s2"] + r["t2"]

    l_pool = l_out // pool
    c_out = z.shape[-1]
    z = z[:, : l_pool * pool, :].reshape(b, l_pool, pool, c_out)
    return jnp.max(z, axis=2)                                  # NLC (b, l_pool, c_out)


# ----------------------------------------------------------------------------
# Main
# ----------------------------------------------------------------------------

if __name__ == "__main__":
    B, C_IN, C_OUT, L = 4, 32, 48, 64          # AaronBlock(32 -> 48)
    K, PAD, POOL = 3, 1, 2
    W_BITS, A_BITS = 8, 8                       # quantizer scales omitted (see TODO)

    key = jax.random.PRNGKey(0)
    kp, kx = jax.random.split(key)
    params, ref_params = init_params(kp, C_IN, C_OUT, K)

    # PyTorch Conv1d convention is NCL; the fused kernel consumes NLC (channels on
    # lanes).  In a real network the preceding layer keeps activations in NLC so no
    # transpose/pad is needed in the hot path.
    x_ncl = 1.5 * jax.random.normal(kx, (B, C_IN, L), jnp.float32)
    x_nlc = jnp.transpose(x_ncl, (0, 2, 1))

    l_pool = (L + 2 * PAD - K + 1) // POOL
    ref_nlc = reference_forward_nlc(x_nlc, ref_params, ksize=K, padding=PAD, pool=POOL)

    # Performance path: NLC in -> NLC out with channels lane-padded to 128.
    fwd = jax.jit(functools.partial(aaron_block_forward_nlc, params=params,
                                    ksize=K, padding=PAD, pool=POOL))
    y = fwd(x_nlc)
    jax.block_until_ready(y)
    assert y.shape == (B, l_pool, params["pw_w"].shape[1]), y.shape
    assert bool(jnp.all(jnp.isfinite(y)))
    max_err = float(jnp.max(jnp.abs(y[:, :, :C_OUT] - ref_nlc)))
    assert bool(jnp.allclose(y[:, :, :C_OUT], ref_nlc, atol=5e-2, rtol=5e-2)), (
        "max |diff| = %f" % max_err)

    # PyTorch-layout drop-in wrapper (NCL in / NCL out), same semantics as AaronBlock.
    fwd_ncl = jax.jit(functools.partial(aaron_block_forward_ncl, params=params,
                                        ksize=K, padding=PAD, pool=POOL))
    y_ncl = fwd_ncl(x_ncl)
    jax.block_until_ready(y_ncl)
    assert y_ncl.shape == (B, C_OUT, l_pool), y_ncl.shape
    assert bool(jnp.allclose(y_ncl, jnp.transpose(ref_nlc, (0, 2, 1)),
                             atol=5e-2, rtol=5e-2))

    print("KERNEL_OK")
</pallas_src>

<mosaic_0001>
module attributes {stable_mosaic.version = 11 : i64} {
  func.func @aaron_block_kernel(%arg0: i32, %arg1: memref<2x64x32xf32, #tpu.memory_space<vmem>>, %arg2: memref<3x32xf32, #tpu.memory_space<vmem>>, %arg3: memref<1x32xf32, #tpu.memory_space<vmem>>, %arg4: memref<32x128xbf16, #tpu.memory_space<vmem>>, %arg5: memref<1x128xf32, #tpu.memory_space<vmem>>, %arg6: memref<64x128xf32, #tpu.memory_space<vmem>>, %arg7: memref<2x66x32xf32, #tpu.memory_space<vmem>>, %arg8: memref<128x128xf32, #tpu.memory_space<vmem>>) attributes {dimension_semantics = [#tpu.dimension_semantics<parallel>], iteration_bounds = array<i64: 2>, scalar_prefetch = 0 : i64, scratch_operands = 2 : i64, tpu.core_type = #tpu.core_type<tc>, window_params = [{transform_indices = @transform_0, window_bounds = array<i64: 2, 64, 32>}, {pipeline_mode = #tpu.pipeline_mode<synchronous>, transform_indices = @transform_1, window_bounds = array<i64: 3, 32>}, {pipeline_mode = #tpu.pipeline_mode<synchronous>, transform_indices = @transform_2, window_bounds = array<i64: 1, 32>}, {pipeline_mode = #tpu.pipeline_mode<synchronous>, transform_indices = @transform_3, window_bounds = array<i64: 32, 128>}, {pipeline_mode = #tpu.pipeline_mode<synchronous>, transform_indices = @transform_4, window_bounds = array<i64: 1, 128>}, {transform_indices = @transform_5, window_bounds = array<i64: 64, 128>}]} {
    %cst = arith.constant 0.000000e+00 : f32
    %0 = vector.broadcast %cst : f32 to vector<2x1x32xf32>
    %c0 = arith.constant 0 : index
    %c0_0 = arith.constant 0 : index
    %c0_1 = arith.constant 0 : index
    %1 = vector.load %arg7[%c0, %c0_0, %c0_1] : memref<2x66x32xf32, #tpu.memory_space<vmem>>, vector<2x1x32xf32>
    tpu.vector_store %arg7[%c0, %c0_0, %c0_1], %0 {strides = array<i32>} : memref<2x66x32xf32, #tpu.memory_space<vmem>>, vector<2x1x32xf32>,
    %c0_2 = arith.constant 0 : index
    %c65 = arith.constant 65 : index
    %c0_3 = arith.constant 0 : index
    %2 = vector.load %arg7[%c0_2, %c65, %c0_3] : memref<2x66x32xf32, #tpu.memory_space<vmem>>, vector<2x1x32xf32>
    tpu.vector_store %arg7[%c0_2, %c65, %c0_3], %0 {strides = array<i32>} : memref<2x66x32xf32, #tpu.memory_space<vmem>>, vector<2x1x32xf32>,
    %c0_4 = arith.constant 0 : index
    %c0_5 = arith.constant 0 : index
    %c0_6 = arith.constant 0 : index
    %3 = vector.load %arg1[%c0_4, %c0_5, %c0_6] : memref<2x64x32xf32, #tpu.memory_space<vmem>>, vector<2x64x32xf32>
    %c0_7 = arith.constant 0 : index
    %c1 = arith.constant 1 : index
    %c0_8 = arith.constant 0 : index
    %4 = vector.load %arg7[%c0_7, %c1, %c0_8] : memref<2x66x32xf32, #tpu.memory_space<vmem>>, vector<2x64x32xf32>
    tpu.vector_store %arg7[%c0_7, %c1, %c0_8], %3 {strides = array<i32>} : memref<2x66x32xf32, #tpu.memory_space<vmem>>, vector<2x64x32xf32>,
    %c0_9 = arith.constant 0 : index
    %c0_10 = arith.constant 0 : index
    %c0_11 = arith.constant 0 : index
    %5 = vector.load %arg7[%c0_9, %c0_10, %c0_11] : memref<2x66x32xf32, #tpu.memory_space<vmem>>, vector<2x64x32xf32>
    %c0_12 = arith.constant 0 : index
    %c0_13 = arith.constant 0 : index
    %6 = vector.load %arg2[%c0_12, %c0_13] : memref<3x32xf32, #tpu.memory_space<vmem>>, vector<1x32xf32>
    %7 = vector.shape_cast %6 : vector<1x32xf32> to vector<1x1x32xf32>
    %8 = vector.broadcast %7 : vector<1x1x32xf32> to vector<2x64x32xf32>
    %9 = arith.mulf %5, %8 : vector<2x64x32xf32>
    %c0_14 = arith.constant 0 : index
    %c1_15 = arith.constant 1 : index
    %c0_16 = arith.constant 0 : index
    %10 = vector.load %arg7[%c0_14, %c1_15, %c0_16] : memref<2x66x32xf32, #tpu.memory_space<vmem>>, vector<2x64x32xf32>
    %c1_17 = arith.constant 1 : index
    %c0_18 = arith.constant 0 : index
    %11 = vector.load %arg2[%c1_17, %c0_18] : memref<3x32xf32, #tpu.memory_space<vmem>>, vector<1x32xf32>
    %12 = vector.shape_cast %11 : vector<1x32xf32> to vector<1x1x32xf32>
    %13 = vector.broadcast %12 : vector<1x1x32xf32> to vector<2x64x32xf32>
    %14 = arith.mulf %10, %13 : vector<2x64x32xf32>
    %15 = arith.addf %9, %14 : vector<2x64x32xf32>
    %c0_19 = arith.constant 0 : index
    %c2 = arith.constant 2 : index
    %c0_20 = arith.constant 0 : index
    %16 = vector.load %arg7[%c0_19, %c2, %c0_20] : memref<2x66x32xf32, #tpu.memory_space<vmem>>, vector<2x64x32xf32>
    %c2_21 = arith.constant 2 : index
    %c0_22 = arith.constant 0 : index
    %17 = vector.load %arg2[%c2_21, %c0_22] : memref<3x32xf32, #tpu.memory_space<vmem>>, vector<1x32xf32>
    %18 = vector.shape_cast %17 : vector<1x32xf32> to vector<1x1x32xf32>
    %19 = vector.broadcast %18 : vector<1x1x32xf32> to vector<2x64x32xf32>
    %20 = arith.mulf %16, %19 : vector<2x64x32xf32>
    %21 = arith.addf %15, %20 : vector<2x64x32xf32>
    %c0_23 = arith.constant 0 : index
    %c0_24 = arith.constant 0 : index
    %22 = vector.load %arg3[%c0_23, %c0_24] : memref<1x32xf32, #tpu.memory_space<vmem>>, vector<1x32xf32>
    %23 = vector.shape_cast %22 : vector<1x32xf32> to vector<1x1x32xf32>
    %24 = vector.broadcast %23 : vector<1x1x32xf32> to vector<2x64x32xf32>
    %25 = arith.addf %21, %24 : vector<2x64x32xf32>
    %cst_25 = arith.constant 0.000000e+00 : f32
    %26 = vector.broadcast %cst_25 : f32 to vector<2x64x32xf32>
    %27 = arith.maximumf %25, %26 : vector<2x64x32xf32>
    %28 = vector.shape_cast %27 : vector<2x64x32xf32> to vector<128x32xf32>
    %29 = arith.truncf %28 : vector<128x32xf32> to vector<128x32xbf16>
    %c0_26 = arith.constant 0 : index
    %c0_27 = arith.constant 0 : index
    %30 = vector.load %arg4[%c0_26, %c0_27] : memref<32x128xbf16, #tpu.memory_space<vmem>>, vector<32x128xbf16>
    %cst_28 = arith.constant dense<0.000000e+00> : vector<128x128xf32>
    %31 = tpu.matmul %29, %30, %cst_28 {dimension_numbers = #tpu.dot_dimension_numbers<[1], [0], [0], [1], [0, 0, 1, 1], [], []>} : vector<128x32xbf16>, vector<32x128xbf16>, vector<128x128xf32> -> vector<128x128xf32>
    %c0_29 = arith.constant 0 : index
    %c0_30 = arith.constant 0 : index
    %32 = vector.load %arg5[%c0_29, %c0_30] : memref<1x128xf32, #tpu.memory_space<vmem>>, vector<1x128xf32>
    %33 = vector.broadcast %32 : vector<1x128xf32> to vector<128x128xf32>
    %34 = arith.addf %31, %33 : vector<128x128xf32>
    %c0_31 = arith.constant 0 : index
    %c0_32 = arith.constant 0 : index
    %35 = vector.load %arg8[%c0_31, %c0_32] : memref<128x128xf32, #tpu.memory_space<vmem>>, vector<128x128xf32>
    tpu.vector_store %arg8[%c0_31, %c0_32], %34 {strides = array<i32>} : memref<128x128xf32, #tpu.memory_space<vmem>>, vector<128x128xf32>,
    %c0_33 = arith.constant 0 : index
    %c0_34 = arith.constant 0 : index
    %36 = tpu.strided_load %arg8[%c0_33, %c0_34] {strides = array<i32: 2, 1>} : memref<128x128xf32, #tpu.memory_space<vmem>>, vector<64x128xf32>
    %c1_35 = arith.constant 1 : index
    %c0_36 = arith.constant 0 : index
    %37 = tpu.strided_load %arg8[%c1_35, %c0_36] {strides = array<i32: 2, 1>} : memref<128x128xf32, #tpu.memory_space<vmem>>, vector<64x128xf32>
    %38 = arith.maximumf %36, %37 : vector<64x128xf32>
    %c0_37 = arith.constant 0 : index
    %c0_38 = arith.constant 0 : index
    %39 = vector.load %arg6[%c0_37, %c0_38] : memref<64x128xf32, #tpu.memory_space<vmem>>, vector<64x128xf32>
    tpu.vector_store %arg6[%c0_37, %c0_38], %38 {strides = array<i32>} : memref<64x128xf32, #tpu.memory_space<vmem>>, vector<64x128xf32>,
    return
  }
  func.func @transform_0(%arg0: i32) -> (i32, i32, i32) {
    %c0_i32 = arith.constant 0 : i32
    %c0_i32_0 = arith.constant 0 : i32
    %c0_i32_1 = arith.constant 0 : i32
    return %arg0, %c0_i32, %c0_i32_0 : i32, i32, i32
  }
  func.func @transform_1(%arg0: i32) -> (i32, i32) {
    %c0_i32 = arith.constant 0 : i32
    %c0_i32_0 = arith.constant 0 : i32
    %c0_i32_1 = arith.constant 0 : i32
    return %c0_i32, %c0_i32_0 : i32, i32
  }
  func.func @transform_2(%arg0: i32) -> (i32, i32) {
    %c0_i32 = arith.constant 0 : i32
    %c0_i32_0 = arith.constant 0 : i32
    %c0_i32_1 = arith.constant 0 : i32
    return %c0_i32, %c0_i32_0 : i32, i32
  }
  func.func @transform_3(%arg0: i32) -> (i32, i32) {
    %c0_i32 = arith.constant 0 : i32
    %c0_i32_0 = arith.constant 0 : i32
    %c0_i32_1 = arith.constant 0 : i32
    return %c0_i32, %c0_i32_0 : i32, i32
  }
  func.func @transform_4(%arg0: i32) -> (i32, i32) {
    %c0_i32 = arith.constant 0 : i32
    %c0_i32_0 = arith.constant 0 : i32
    %c0_i32_1 = arith.constant 0 : i32
    return %c0_i32, %c0_i32_0 : i32, i32
  }
  func.func @transform_5(%arg0: i32) -> (i32, i32) {
    %c0_i32 = arith.constant 0 : i32
    %c0_i32_0 = arith.constant 0 : i32
    return %arg0, %c0_i32 : i32, i32
  }
}

</mosaic_0001>

<llo_original>
// kernel: aaron_block_forward_nlc.1
$region0: #{aaron_block_forward_nlc.1}
  #allocation0 [shape = 'u32[]', space=smem, size = 0x4, offset = 0x4, fixed_abs, tag = 'smem constant byte address 0x4 - core index']
  #allocation1 [shape = 'u32[72,128]{1,0:T(1,128)}', space=vmem, size = 0x9000, scoped, tag = 'internal scratch']
  #allocation2 [shape = 'f32[2,66,32]{2,1,0:T(8,128)}', space=vmem, size = 0x12000, scoped, tag = 'scratch operand']
  #allocation3 [shape = 'f32[128,128]{1,0:T(8,128)}', space=vmem, size = 0x10000, scoped, tag = 'scratch operand']
  %s0 = inlined_call_operand.vmem [shape: f32[4,64,32], index: 0, kind: input, shape index: {}]
  %s1 = inlined_call_operand.vmem [shape: f32[3,32], index: 1, kind: input, shape index: {}]
  %s2 = inlined_call_operand.vmem [shape: f32[1,32], index: 2, kind: input, shape index: {}]
  %s3 = inlined_call_operand.vmem [shape: bf16[32,128], index: 3, kind: input, shape index: {}]
  %s4 = inlined_call_operand.vmem [shape: f32[1,128], index: 4, kind: input, shape index: {}]
  %s5 = inlined_call_operand.hbm [shape: f32[128,128], index: 5, kind: output, shape index: {}]
  %s6 = sld [smem:[#allocation0]]
  $region53: #{aaron_block_forward_nlc.1} parent=0
    _
  %s8 = ssub.s32 1, %s6
  %s9 = scalar_select 0, %s8, %s6
  $region1: #{aaron_block_forward_nlc.1} parent=0
    #allocation4 [shape = 'u8[65536]{0}', space=vmem, size = 0x10000, scoped, tag = 'output window, operand 0']
    #allocation5 [shape = 's32[2]{0}', space=sflag, size = 0x8, scoped, tag = 'scoped memory for aaron_block_forward_nlc.1']
    %10 = vsyncpa [#allocation5], 0
    %s11 = scalar_lea.sflag [#allocation5], 1
    %12 = vsyncpa %s11, 0
    loop: start=0, step=1, limit=4
    $region2: #{aaron_block_forward_nlc.1} parent=1 // loop_pre_header
      _
    $region3: #{aaron_block_forward_nlc.1} parent=1 // loop_header
      %s14 = sphi 0, %s18
      %p15 = scmp.ge.s32.totalorder %s14, 4
      %s24 = sphi 0, %s26
      %s27 = sphi 0, %s24
      %s28 = sphi 0, %s27
      %s44 = sphi 0, %s28
      %s48 = sphi 0, %s48
      %s50 = sphi 0, %s48
      %s51 = sphi 0, %s50
      %s65 = sphi 0, %s51
      %s69 = sphi 0, %s69
      %s71 = sphi 0, %s69
      %s72 = sphi 0, %s71
      %s86 = sphi 0, %s72
      %s90 = sphi 0, %s90
      %s92 = sphi 0, %s90
      %s93 = sphi 0, %s92
      %s107 = sphi 0, %s93
      %s111 = sphi 0, %s111
      %s113 = sphi 0, %s111
      %s114 = sphi 0, %s113
      %s128 = sphi 0, %s114
      %s134 = sphi 0, %s136
      %s137 = sphi 0, %s134
      %s138 = sphi 0, %s137
      %s154 = sphi 0, %s138
    $region4: #{aaron_block_forward_nlc.1} parent=1 // loop_header_branch
      %17 = sbr.rel (%p15) target = $region8
    $region5: #{aaron_block_forward_nlc.1} parent=1 // loop_body
      %s19 = ssub.s32 %s14, 1
      %s20 = ssub.s32 %s14, 2
      %s21 = sadd.s32 %s14, 1
      %s22 = ssub.s32 %s14, %s21
      %p23 = scmp.eq.s32.totalorder %s22, 0
      %s25 = sadd.s32 %s24, 1
      %s26 = scalar_select %p23, %s24, %s25
      %p29 = pneg %p23
      %p30 = scmp.eq.s32.totalorder %s14, 1
      %p31 = por %p29, %p30
      %p32 = scmp.ne.s32.totalorder %s24, %s27
      %p33 = scmp.eq.s32.totalorder %s14, 0
      %p34 = por %p32, %p33
      %p35 = scmp.ne.s32.totalorder %s24, %s27
      %p36 = scmp.eq.s32.totalorder %s19, 1
      %p37 = por %p35, %p36
      %p38 = scmp.ne.s32.totalorder %s27, %s28
      %p39 = scmp.eq.s32.totalorder %s19, 0
      %p40 = por %p38, %p39
      %p41 = scmp.ne.s32.totalorder %s27, %s28
      %p42 = scmp.eq.s32.totalorder %s20, 1
      %p43 = por %p41, %p42
      %p45 = scmp.ne.s32.totalorder %s28, %s44
      %p46 = scmp.eq.s32.totalorder %s20, 0
      %p47 = por %p45, %p46
      %s49 = sadd.s32 %s48, 1
      %p52 = scmp.eq.s32.totalorder %s14, 1
      %p53 = scmp.ne.s32.totalorder %s48, %s50
      %p54 = scmp.eq.s32.totalorder %s14, 0
      %p55 = por %p53, %p54
      %p56 = scmp.ne.s32.totalorder %s48, %s50
      %p57 = scmp.eq.s32.totalorder %s19, 1
      %p58 = por %p56, %p57
      %p59 = scmp.ne.s32.totalorder %s50, %s51
      %p60 = scmp.eq.s32.totalorder %s19, 0
      %p61 = por %p59, %p60
      %p62 = scmp.ne.s32.totalorder %s50, %s51
      %p63 = scmp.eq.s32.totalorder %s20, 1
      %p64 = por %p62, %p63
      %p66 = scmp.ne.s32.totalorder %s51, %s65
      %p67 = scmp.eq.s32.totalorder %s20, 0
      %p68 = por %p66, %p67
      %s70 = sadd.s32 %s69, 1
      %p73 = scmp.eq.s32.totalorder %s14, 1
      %p74 = scmp.ne.s32.totalorder %s69, %s71
      %p75 = scmp.eq.s32.totalorder %s14, 0
      %p76 = por %p74, %p75
      %p77 = scmp.ne.s32.totalorder %s69, %s71
      %p78 = scmp.eq.s32.totalorder %s19, 1
      %p79 = por %p77, %p78
      %p80 = scmp.ne.s32.totalorder %s71, %s72
      %p81 = scmp.eq.s32.totalorder %s19, 0
      %p82 = por %p80, %p81
      %p83 = scmp.ne.s32.totalorder %s71, %s72
      %p84 = scmp.eq.s32.totalorder %s20, 1
      %p85 = por %p83, %p84
      %p87 = scmp.ne.s32.totalorder %s72, %s86
      %p88 = scmp.eq.s32.totalorder %s20, 0
      %p89 = por %p87, %p88
      %s91 = sadd.s32 %s90, 1
      %p94 = scmp.eq.s32.totalorder %s14, 1
      %p95 = scmp.ne.s32.totalorder %s90, %s92
      %p96 = scmp.eq.s32.totalorder %s14, 0
      %p97 = por %p95, %p96
      %p98 = scmp.ne.s32.totalorder %s90, %s92
      %p99 = scmp.eq.s32.totalorder %s19, 1
      %p100 = por %p98, %p99
      %p101 = scmp.ne.s32.totalorder %s92, %s93
      %p102 = scmp.eq.s32.totalorder %s19, 0
      %p103 = por %p101, %p102
      %p104 = scmp.ne.s32.totalorder %s92, %s93
      %p105 = scmp.eq.s32.totalorder %s20, 1
      %p106 = por %p104, %p105
      %p108 = scmp.ne.s32.totalorder %s93, %s107
      %p109 = scmp.eq.s32.totalorder %s20, 0
      %p110 = por %p108, %p109
      %s112 = sadd.s32 %s111, 1
      %p115 = scmp.eq.s32.totalorder %s14, 1
      %p116 = scmp.ne.s32.totalorder %s111, %s113
      %p117 = scmp.eq.s32.totalorder %s14, 0
      %p118 = por %p116, %p117
      %p119 = scmp.ne.s32.totalorder %s111, %s113
      %p120 = scmp.eq.s32.totalorder %s19, 1
      %p121 = por %p119, %p120
      %p122 = scmp.ne.s32.totalorder %s113, %s114
      %p123 = scmp.eq.s32.totalorder %s19, 0
      %p124 = por %p122, %p123
      %p125 = scmp.ne.s32.totalorder %s113, %s114
      %p126 = scmp.eq.s32.totalorder %s20, 1
      %p127 = por %p125, %p126
      %p129 = scmp.ne.s32.totalorder %s114, %s128
      %p130 = scmp.eq.s32.totalorder %s20, 0
      %p131 = por %p129, %p130
      %s132 = ssub.s32 %s14, %s21
      %p133 = scmp.eq.s32.totalorder %s132, 0
      %s135 = sadd.s32 %s134, 1
      %s136 = scalar_select %p133, %s134, %s135
      %p139 = pneg %p133
      %p140 = scmp.eq.s32.totalorder %s14, 1
      %p141 = por %p139, %p140
      %p142 = scmp.ne.s32.totalorder %s134, %s137
      %p143 = scmp.eq.s32.totalorder %s14, 0
      %p144 = por %p142, %p143
      %p145 = scmp.ne.s32.totalorder %s134, %s137
      %p146 = scmp.eq.s32.totalorder %s19, 1
      %p147 = por %p145, %p146
      %p148 = scmp.ne.s32.totalorder %s137, %s138
      %p149 = scmp.eq.s32.totalorder %s19, 0
      %p150 = por %p148, %p149
      %p151 = scmp.ne.s32.totalorder %s137, %s138
      %p152 = scmp.eq.s32.totalorder %s20, 1
      %p153 = por %p151, %p152
      %p155 = scmp.ne.s32.totalorder %s138, %s154
      %p156 = scmp.eq.s32.totalorder %s20, 0
      %p157 = por %p155, %p156
      %p158 = scmp.le.s32.totalorder 1, %s14
      %p159 = scmp.lt.s32.totalorder %s14, 3
      %p160 = pnand %p158, %p159
      %p161 = pneg %p160
      // Predicated region
      $region9: #{aaron_block_forward_nlc.1} parent=5 // pred_check
        _
      $region10: #{aaron_block_forward_nlc.1} parent=5 // pred_check_branch
        %163 = sbr.rel (%p160) target = $region12
      $region11: #{aaron_block_forward_nlc.1} parent=5 // pred_region
        %s164 = ssub.s32 %s14, 1
        // Predicated region
        $region13: #{aaron_block_forward_nlc.1} parent=11 // pred_check
          %p165 = pneg %p61
        $region14: #{aaron_block_forward_nlc.1} parent=11 // pred_check_branch
          %167 = sbr.rel (%p165) target = $region16
        $region15: #{aaron_block_forward_nlc.1} parent=11 // pred_region
          _
        $region16: #{aaron_block_forward_nlc.1} parent=11 // pred_fallthru
          _
        // Predicated region
        $region17: #{aaron_block_forward_nlc.1} parent=11 // pred_check
          %p168 = pneg %p82
        $region18: #{aaron_block_forward_nlc.1} parent=11 // pred_check_branch
          %170 = sbr.rel (%p168) target = $region20
        $region19: #{aaron_block_forward_nlc.1} parent=11 // pred_region
          _
        $region20: #{aaron_block_forward_nlc.1} parent=11 // pred_fallthru
          _
        // Predicated region
        $region21: #{aaron_block_forward_nlc.1} parent=11 // pred_check
          %p171 = pneg %p103
        $region22: #{aaron_block_forward_nlc.1} parent=11 // pred_check_branch
          %173 = sbr.rel (%p171) target = $region24
        $region23: #{aaron_block_forward_nlc.1} parent=11 // pred_region
          _
        $region24: #{aaron_block_forward_nlc.1} parent=11 // pred_fallthru
          _
        // Predicated region
        $region25: #{aaron_block_forward_nlc.1} parent=11 // pred_check
          %p174 = pneg %p124
        $region26: #{aaron_block_forward_nlc.1} parent=11 // pred_check_branch
          %176 = sbr.rel (%p174) target = $region28
        $region27: #{aaron_block_forward_nlc.1} parent=11 // pred_region
          _
        $region28: #{aaron_block_forward_nlc.1} parent=11 // pred_fallthru
          _
      $region12: #{aaron_block_forward_nlc.1} parent=5 // pred_fallthru
        _
      %p177 = scmp.lt.s32.totalorder %s14, 2
      // Predicated region
      $region29: #{aaron_block_forward_nlc.1} parent=5 // pred_check
        %p178 = pneg %p177
      $region30: #{aaron_block_forward_nlc.1} parent=5 // pred_check_branch
        %180 = sbr.rel (%p178) target = $region32
      $region31: #{aaron_block_forward_nlc.1} parent=5 // pred_region
        // Predicated region
        $region33: #{aaron_block_forward_nlc.1} parent=31 // pred_check
          %p181 = pneg %p34
        $region34: #{aaron_block_forward_nlc.1} parent=31 // pred_check_branch
          %183 = sbr.rel (%p181) target = $region36
        $region35: #{aaron_block_forward_nlc.1} parent=31 // pred_region
          %s184 = smul.u32 2, %s14
          %p185 = scmp.lt.s32.totalorder %s184, 3
          %s186 = scalar_select %p185, %s184, 3
          %s187 = smul.addr %s186, 8
          %s188 = smul.addr %s187, 8
          %s189 = scalar_lea.vmem %s0, %s188
          %s190 = smul.u32 2, %s14
        $region36: #{aaron_block_forward_nlc.1} parent=31 // pred_fallthru
          _
      $region32: #{aaron_block_forward_nlc.1} parent=5 // pred_fallthru
        _
      %p191 = scmp.le.s32.totalorder 1, %s14
      %p192 = scmp.lt.s32.totalorder %s14, 3
      %p193 = pnand %p191, %p192
      %p194 = pneg %p193
      // Predicated region
      $region37: #{aaron_block_forward_nlc.1} parent=5 // pred_check
        _
      $region38: #{aaron_block_forward_nlc.1} parent=5 // pred_check_branch
        %196 = sbr.rel (%p193) target = $region40
      $region39: #{aaron_block_forward_nlc.1} parent=5 // pred_region
        %s197 = ssub.s32 %s14, 1
        %s198 = smul.u32 2, %s19
        %p199 = scmp.lt.s32.totalorder %s198, 3
        %s200 = scalar_select %p199, %s198, 3
        %s201 = smul.addr %s200, 8
        %s202 = smul.addr %s201, 8
        %s203 = scalar_lea.vmem %s0, %s202
        %p204 = pneg %p40
        %p205 = pneg %p37
        %p206 = pneg %p61
        %p207 = pneg %p58
        %p208 = pneg %p82
        %p209 = pneg %p79
        %p210 = pneg %p103
        %p211 = pneg %p100
        %p212 = pneg %p124
        %p213 = pneg %p121
        %p214 = pneg %p150
        %p215 = pneg %p147
        %s216 = sand.u32 %s137, 1
        %s217 = scalar_lea.sflag [#allocation5], %s216
        %s218 = sand.u32 %s137, 1
        %s219 = smul.addr %s218, 64
        %s220 = scalar_lea.vmem [#allocation4], %s219
        %s221 = smul.u32 2, %s19
        %p222 = scmp.lt.s32.totalorder %s221, 3
        %s223 = scalar_select %p222, %s221, 3
        %s224 = smul.addr %s223, 8
        %s225 = smul.addr %s224, 8
        %s226 = scalar_lea.vmem %s0, %s225
        %s227 = smul.u32 2, %s19
        %s228 = smul.u32 8, %s19
        %vm230 = vcmask 253952
        %231 = vst.msk [vmem:[#allocation2] sm:$0x1] %vm230, 0.0
        %232 = vst.msk [vmem:[#allocation2 + $0x48] sm:$0x1] %vm230, 0.0
        %233 = vst.msk [vmem:[#allocation2 + $0x41] sm:$0x1] %vm230, 0.0
        %234 = vst.msk [vmem:[#allocation2 + $0x89] sm:$0x1] %vm230, 0.0
        %v235 = vld [vmem:[%s226] sm:$0xff]
        %v236 = vld [vmem:[%s226 + $0x8] sm:$0xff]
        %v237 = vld [vmem:[%s226 + $0x10] sm:$0xff]
        %v238 = vld [vmem:[%s226 + $0x18] sm:$0xff]
        %v239 = vld [vmem:[%s226 + $0x20] sm:$0xff]
        %v240 = vld [vmem:[%s226 + $0x28] sm:$0xff]
        %v241 = vld [vmem:[%s226 + $0x30] sm:$0xff]
        %v242 = vld [vmem:[%s226 + $0x38] sm:$0xff]
        %v243 = vld [vmem:[%s226 + $0x40] sm:$0xff]
        %v244 = vld [vmem:[%s226 + $0x48] sm:$0xff]
        %v245 = vld [vmem:[%s226 + $0x50] sm:$0xff]
        %v246 = vld [vmem:[%s226 + $0x58] sm:$0xff]
        %v247 = vld [vmem:[%s226 + $0x60] sm:$0xff]
        %v248 = vld [vmem:[%s226 + $0x68] sm:$0xff]
        %v249 = vld [vmem:[%s226 + $0x70] sm:$0xff]
        %v250 = vld [vmem:[%s226 + $0x78] sm:$0xff]
        %vm251 = vcmask 261120
        %252 = vst.msk [vmem:[#allocation2 + $0x1] sm:$0xff] %vm251, %v235
        %253 = vst.msk [vmem:[#allocation2 + $0x9] sm:$0xff] %vm251, %v236
        %254 = vst.msk [vmem:[#allocation2 + $0x11] sm:$0xff] %vm251, %v237
        %255 = vst.msk [vmem:[#allocation2 + $0x19] sm:$0xff] %vm251, %v238
        %256 = vst.msk [vmem:[#allocation2 + $0x21] sm:$0xff] %vm251, %v239
        %257 = vst.msk [vmem:[#allocation2 + $0x29] sm:$0xff] %vm251, %v240
        %258 = vst.msk [vmem:[#allocation2 + $0x31] sm:$0xff] %vm251, %v241
        %259 = vst.msk [vmem:[#allocation2 + $0x39] sm:$0xff] %vm251, %v242
        %260 = vst.msk [vmem:[#allocation2 + $0x49] sm:$0xff] %vm251, %v243
        %261 = vst.msk [vmem:[#allocation2 + $0x51] sm:$0xff] %vm251, %v244
        %262 = vst.msk [vmem:[#allocation2 + $0x59] sm:$0xff] %vm251, %v245
        %263 = vst.msk [vmem:[#allocation2 + $0x61] sm:$0xff] %vm251, %v246
        %264 = vst.msk [vmem:[#allocation2 + $0x69] sm:$0xff] %vm251, %v247
        %265 = vst.msk [vmem:[#allocation2 + $0x71] sm:$0xff] %vm251, %v248
        %266 = vst.msk [vmem:[#allocation2 + $0x79] sm:$0xff] %vm251, %v249
        %267 = vst.msk [vmem:[#allocation2 + $0x81] sm:$0xff] %vm251, %v250
        %v268 = vld [vmem:[#allocation2] sm:$0xff]
        %v269 = vld [vmem:[#allocation2 + $0x8] sm:$0xff]
        %v270 = vld [vmem:[#allocation2 + $0x10] sm:$0xff]
        %v271 = vld [vmem:[#allocation2 + $0x18] sm:$0xff]
        %v272 = vld [vmem:[#allocation2 + $0x20] sm:$0xff]
        %v273 = vld [vmem:[#allocation2 + $0x28] sm:$0xff]
        %v274 = vld [vmem:[#allocation2 + $0x30] sm:$0xff]
        %v275 = vld [vmem:[#allocation2 + $0x38] sm:$0xff]
        %v276 = vld [vmem:[#allocation2 + $0x48] sm:$0xff]
        %v277 = vld [vmem:[#allocation2 + $0x50] sm:$0xff]
        %v278 = vld [vmem:[#allocation2 + $0x58] sm:$0xff]
        %v279 = vld [vmem:[#allocation2 + $0x60] sm:$0xff]
        %v280 = vld [vmem:[#allocation2 + $0x68] sm:$0xff]
        %v281 = vld [vmem:[#allocation2 + $0x70] sm:$0xff]
        %v282 = vld [vmem:[#allocation2 + $0x78] sm:$0xff]
        %v283 = vld [vmem:[#allocation2 + $0x80] sm:$0xff]
        %v284 = vld [vmem:[%s1] sm:$0x1]
        %v285 = vperm.slane %v284, 0
        %v286 = vmul.f32 %v268, %v285
        %v287 = vmul.f32 %v269, %v285
        %v288 = vmul.f32 %v270, %v285
        %v289 = vmul.f32 %v271, %v285
        %v290 = vmul.f32 %v272, %v285
        %v291 = vmul.f32 %v273, %v285
        %v292 = vmul.f32 %v274, %v285
        %v293 = vmul.f32 %v275, %v285
        %v294 = vmul.f32 %v276, %v285
        %v295 = vmul.f32 %v277, %v285
        %v296 = vmul.f32 %v278, %v285
        %v297 = vmul.f32 %v279, %v285
        %v298 = vmul.f32 %v280, %v285
        %v299 = vmul.f32 %v281, %v285
        %v300 = vmul.f32 %v282, %v285
        %v301 = vmul.f32 %v283, %v285
        %v302 = vld [vmem:[#allocation2 + $0x1] sm:$0xff]
        %v303 = vld [vmem:[#allocation2 + $0x9] sm:$0xff]
        %v304 = vld [vmem:[#allocation2 + $0x11] sm:$0xff]
        %v305 = vld [vmem:[#allocation2 + $0x19] sm:$0xff]
        %v306 = vld [vmem:[#allocation2 + $0x21] sm:$0xff]
        %v307 = vld [vmem:[#allocation2 + $0x29] sm:$0xff]
        %v308 = vld [vmem:[#allocation2 + $0x31] sm:$0xff]
        %v309 = vld [vmem:[#allocation2 + $0x39] sm:$0xff]
        %v310 = vld [vmem:[#allocation2 + $0x49] sm:$0xff]
        %v311 = vld [vmem:[#allocation2 + $0x51] sm:$0xff]
        %v312 = vld [vmem:[#allocation2 + $0x59] sm:$0xff]
        %v313 = vld [vmem:[#allocation2 + $0x61] sm:$0xff]
        %v314 = vld [vmem:[#allocation2 + $0x69] sm:$0xff]
        %v315 = vld [vmem:[#allocation2 + $0x71] sm:$0xff]
        %v316 = vld [vmem:[#allocation2 + $0x79] sm:$0xff]
        %v317 = vld [vmem:[#allocation2 + $0x81] sm:$0xff]
        %v318 = vld [vmem:[%s1 + $0x1] sm:$0x1]
        %v319 = vperm.slane %v318, 0
        %v320 = vmul.f32 %v302, %v319
        %v321 = vmul.f32 %v303, %v319
        %v322 = vmul.f32 %v304, %v319
        %v323 = vmul.f32 %v305, %v319
        %v324 = vmul.f32 %v306, %v319
        %v325 = vmul.f32 %v307, %v319
        %v326 = vmul.f32 %v308, %v319
        %v327 = vmul.f32 %v309, %v319
        %v328 = vmul.f32 %v310, %v319
        %v329 = vmul.f32 %v311, %v319
        %v330 = vmul.f32 %v312, %v319
        %v331 = vmul.f32 %v313, %v319
        %v332 = vmul.f32 %v314, %v319
        %v333 = vmul.f32 %v315, %v319
        %v334 = vmul.f32 %v316, %v319
        %v335 = vmul.f32 %v317, %v319
        %v336 = vadd.f32 %v286, %v320
        %v337 = vadd.f32 %v287, %v321
        %v338 = vadd.f32 %v288, %v322
        %v339 = vadd.f32 %v289, %v323
        %v340 = vadd.f32 %v290, %v324
        %v341 = vadd.f32 %v291, %v325
        %v342 = vadd.f32 %v292, %v326
        %v343 = vadd.f32 %v293, %v327
        %v344 = vadd.f32 %v294, %v328
        %v345 = vadd.f32 %v295, %v329
        %v346 = vadd.f32 %v296, %v330
        %v347 = vadd.f32 %v297, %v331
        %v348 = vadd.f32 %v298, %v332
        %v349 = vadd.f32 %v299, %v333
        %v350 = vadd.f32 %v300, %v334
        %v351 = vadd.f32 %v301, %v335
        %v352 = vld [vmem:[#allocation2 + $0x2] sm:$0xff]
        %v353 = vld [vmem:[#allocation2 + $0xa] sm:$0xff]
        %v354 = vld [vmem:[#allocation2 + $0x12] sm:$0xff]
        %v355 = vld [vmem:[#allocation2 + $0x1a] sm:$0xff]
        %v356 = vld [vmem:[#allocation2 + $0x22] sm:$0xff]
        %v357 = vld [vmem:[#allocation2 + $0x2a] sm:$0xff]
        %v358 = vld [vmem:[#allocation2 + $0x32] sm:$0xff]
        %v359 = vld [vmem:[#allocation2 + $0x3a] sm:$0xff]
        %v360 = vld [vmem:[#allocation2 + $0x4a] sm:$0xff]
        %v361 = vld [vmem:[#allocation2 + $0x52] sm:$0xff]
        %v362 = vld [vmem:[#allocation2 + $0x5a] sm:$0xff]
        %v363 = vld [vmem:[#allocation2 + $0x62] sm:$0xff]
        %v364 = vld [vmem:[#allocation2 + $0x6a] sm:$0xff]
        %v365 = vld [vmem:[#allocation2 + $0x72] sm:$0xff]
        %v366 = vld [vmem:[#allocation2 + $0x7a] sm:$0xff]
        %v367 = vld [vmem:[#allocation2 + $0x82] sm:$0xff]
        %v368 = vld [vmem:[%s1 + $0x2] sm:$0x1]
        %v369 = vperm.slane %v368, 0
        %v370 = vmul.f32 %v352, %v369
        %v371 = vmul.f32 %v353, %v369
        %v372 = vmul.f32 %v354, %v369
        %v373 = vmul.f32 %v355, %v369
        %v374 = vmul.f32 %v356, %v369
        %v375 = vmul.f32 %v357, %v369
        %v376 = vmul.f32 %v358, %v369
        %v377 = vmul.f32 %v359, %v369
        %v378 = vmul.f32 %v360, %v369
        %v379 = vmul.f32 %v361, %v369
        %v380 = vmul.f32 %v362, %v369
        %v381 = vmul.f32 %v363, %v369
        %v382 = vmul.f32 %v364, %v369
        %v383 = vmul.f32 %v365, %v369
        %v384 = vmul.f32 %v366, %v369
        %v385 = vmul.f32 %v367, %v369
        %v386 = vadd.f32 %v336, %v370
        %v387 = vadd.f32 %v337, %v371
        %v388 = vadd.f32 %v338, %v372
        %v389 = vadd.f32 %v339, %v373
        %v390 = vadd.f32 %v340, %v374
        %v391 = vadd.f32 %v341, %v375
        %v392 = vadd.f32 %v342, %v376
        %v393 = vadd.f32 %v343, %v377
        %v394 = vadd.f32 %v344, %v378
        %v395 = vadd.f32 %v345, %v379
        %v396 = vadd.f32 %v346, %v380
        %v397 = vadd.f32 %v347, %v381
        %v398 = vadd.f32 %v348, %v382
        %v399 = vadd.f32 %v349, %v383
        %v400 = vadd.f32 %v350, %v384
        %v401 = vadd.f32 %v351, %v385
        %v402 = vld [vmem:[%s2] sm:$0x1]
        %v404 = vperm.slane %v402, 0
        %v406 = vadd.f32 %v386, %v404
        %v407 = vadd.f32 %v387, %v404
        %v408 = vadd.f32 %v388, %v404
        %v409 = vadd.f32 %v389, %v404
        %v410 = vadd.f32 %v390, %v404
        %v411 = vadd.f32 %v391, %v404
        %v412 = vadd.f32 %v392, %v404
        %v413 = vadd.f32 %v393, %v404
        %v414 = vadd.f32 %v394, %v404
        %v415 = vadd.f32 %v395, %v404
        %v416 = vadd.f32 %v396, %v404
        %v417 = vadd.f32 %v397, %v404
        %v418 = vadd.f32 %v398, %v404
        %v419 = vadd.f32 %v399, %v404
        %v420 = vadd.f32 %v400, %v404
        %v421 = vadd.f32 %v401, %v404
        %v422 = vmax.f32 %v406, 0.0
        %v423 = vmax.f32 %v407, 0.0
        %v424 = vmax.f32 %v408, 0.0
        %v425 = vmax.f32 %v409, 0.0
        %v426 = vmax.f32 %v410, 0.0
        %v427 = vmax.f32 %v411, 0.0
        %v428 = vmax.f32 %v412, 0.0
        %v429 = vmax.f32 %v413, 0.0
        %v430 = vmax.f32 %v414, 0.0
        %v431 = vmax.f32 %v415, 0.0
        %v432 = vmax.f32 %v416, 0.0
        %v433 = vmax.f32 %v417, 0.0
        %v434 = vmax.f32 %v418, 0.0
        %v435 = vmax.f32 %v419, 0.0
        %v436 = vmax.f32 %v420, 0.0
        %v437 = vmax.f32 %v421, 0.0
        %v438 = vpack.c.bf16 %v423, %v422
        %v439 = vpack.c.bf16 %v425, %v424
        %v440 = vpack.c.bf16 %v427, %v426
        %v441 = vpack.c.bf16 %v429, %v428
        %v442 = vpack.c.bf16 %v431, %v430
        %v443 = vpack.c.bf16 %v433, %v432
        %v444 = vpack.c.bf16 %v435, %v434
        %v445 = vpack.c.bf16 %v437, %v436
        %v446 = vld [vmem:[%s3] sm:$0xf]
        %v447 = vld [vmem:[%s3 + $0x4] sm:$0xf]
        %v448 = vld [vmem:[%s3 + $0x8] sm:$0xf]
        %v449 = vld [vmem:[%s3 + $0xc] sm:$0xf]
        %v450 = vld [vmem:[%s4] sm:$0x1]
        %v452 = vperm.slane %v450, 0
        %v458 = vunpack.c.l.b16 %v446
        %v459 = vunpack.c.l.b16 %v447
        %v460 = vunpack.c.l.b16 %v448
        %v461 = vunpack.c.l.b16 %v449
        %v462 = vpack.c.b16 %v459, %v458
        %v463 = vpack.c.b16 %v461, %v460
        %v467 = vsel %vm251, %v438, 0
        %v470 = vsel %vm251, %v439, 0
        %v473 = vsel %vm251, %v440, 0
        %v476 = vsel %vm251, %v441, 0
        %v479 = vsel %vm251, %v442, 0
        %v482 = vsel %vm251, %v443, 0
        %v485 = vsel %vm251, %v444, 0
        %v488 = vsel %vm251, %v445, 0
        %490 = vmatpush.bf16.msra.mxu0 0
        %491 = vmatpush.bf16.msra.mxu0 0
        %492 = vmatpush.bf16.msra.mxu0 0
        %493 = vmatpush.bf16.msra.mxu0 0
        %494 = vmatpush.bf16.msra.mxu0 0
        %495 = vmatpush.bf16.msra.mxu0 0
        %496 = vmatpush.bf16.msra.mxu0 %v463
        %497 = vmatpush.bf16.msra.mxu0 %v462
        %498 = vmatmul.bf16.gmra.mxu0 %v467
        %v499 = vpop.f32.mrf.mxu0
        %v500 = vadd.f32 %v452, %v499
        %v501 = vpop.f32.mrf.mxu0
        %v502 = vadd.f32 %v452, %v501
        %503 = vmatmul.bf16.gmra.mxu0 %v470
        %v504 = vpop.f32.mrf.mxu0
        %v505 = vadd.f32 %v452, %v504
        %v506 = vpop.f32.mrf.mxu0
        %v507 = vadd.f32 %v452, %v506
        %508 = vmatmul.bf16.gmra.mxu0 %v473
        %v509 = vpop.f32.mrf.mxu0
        %v510 = vadd.f32 %v452, %v509
        %v511 = vpop.f32.mrf.mxu0
        %v512 = vadd.f32 %v452, %v511
        %513 = vmatmul.bf16.gmra.mxu0 %v476
        %v514 = vpop.f32.mrf.mxu0
        %v515 = vadd.f32 %v452, %v514
        %v516 = vpop.f32.mrf.mxu0
        %v517 = vadd.f32 %v452, %v516
        %518 = vmatmul.bf16.gmra.mxu0 %v479
        %v519 = vpop.f32.mrf.mxu0
        %v520 = vadd.f32 %v452, %v519
        %v521 = vpop.f32.mrf.mxu0
        %v522 = vadd.f32 %v452, %v521
        %523 = vmatmul.bf16.gmra.mxu0 %v482
        %v524 = vpop.f32.mrf.mxu0
        %v525 = vadd.f32 %v452, %v524
        %v526 = vpop.f32.mrf.mxu0
        %v527 = vadd.f32 %v452, %v526
        %528 = vmatmul.bf16.gmra.mxu0 %v485
        %v529 = vpop.f32.mrf.mxu0
        %v530 = vadd.f32 %v452, %v529
        %v531 = vpop.f32.mrf.mxu0
        %v532 = vadd.f32 %v452, %v531
        %533 = vmatmul.bf16.gmra.mxu0 %v488
        %v534 = vpop.f32.mrf.mxu0
        %v535 = vadd.f32 %v452, %v534
        %v536 = vpop.f32.mrf.mxu0
        %v537 = vadd.f32 %v452, %v536
        %538 = vdwg.mxu0
        %539 = vst [vmem:[#allocation3] sm:$0xff] %v500
        %540 = vst [vmem:[#allocation3 + $0x8] sm:$0xff] %v502
        %541 = vst [vmem:[#allocation3 + $0x10] sm:$0xff] %v505
        %542 = vst [vmem:[#allocation3 + $0x18] sm:$0xff] %v507
        %543 = vst [vmem:[#allocation3 + $0x20] sm:$0xff] %v510
        %544 = vst [vmem:[#allocation3 + $0x28] sm:$0xff] %v512
        %545 = vst [vmem:[#allocation3 + $0x30] sm:$0xff] %v515
        %546 = vst [vmem:[#allocation3 + $0x38] sm:$0xff] %v517
        %547 = vst [vmem:[#allocation3 + $0x40] sm:$0xff] %v520
        %548 = vst [vmem:[#allocation3 + $0x48] sm:$0xff] %v522
        %549 = vst [vmem:[#allocation3 + $0x50] sm:$0xff] %v525
        %550 = vst [vmem:[#allocation3 + $0x58] sm:$0xff] %v527
        %551 = vst [vmem:[#allocation3 + $0x60] sm:$0xff] %v530
        %552 = vst [vmem:[#allocation3 + $0x68] sm:$0xff] %v532
        %553 = vst [vmem:[#allocation3 + $0x70] sm:$0xff] %v535
        %554 = vst [vmem:[#allocation3 + $0x78] sm:$0xff] %v537
        %v555 = vld [vmem:[#allocation3] ss:$2 sm:$0xff]
        %s556 = scalar_lea.vmem [#allocation3], 16
        %v557 = vld [vmem:[%s556] ss:$2 sm:$0xff]
        %s558 = scalar_lea.vmem [#allocation3], 32
        %v559 = vld [vmem:[%s558] ss:$2 sm:$0xff]
        %s560 = scalar_lea.vmem [#allocation3], 48
        %v561 = vld [vmem:[%s560] ss:$2 sm:$0xff]
        %s562 = scalar_lea.vmem [#allocation3], 64
        %v563 = vld [vmem:[%s562] ss:$2 sm:$0xff]
        %s564 = scalar_lea.vmem [#allocation3], 80
        %v565 = vld [vmem:[%s564] ss:$2 sm:$0xff]
        %s566 = scalar_lea.vmem [#allocation3], 96
        %v567 = vld [vmem:[%s566] ss:$2 sm:$0xff]
        %s568 = scalar_lea.vmem [#allocation3], 112
        %v569 = vld [vmem:[%s568] ss:$2 sm:$0xff]
        %s570 = scalar_lea.vmem [#allocation3], 1
        %v571 = vld [vmem:[%s570] ss:$2 sm:$0xff]
        %s572 = scalar_lea.vmem [#allocation3], 17
        %v573 = vld [vmem:[%s572] ss:$2 sm:$0xff]
        %s574 = scalar_lea.vmem [#allocation3], 33
        %v575 = vld [vmem:[%s574] ss:$2 sm:$0xff]
        %s576 = scalar_lea.vmem [#allocation3], 49
        %v577 = vld [vmem:[%s576] ss:$2 sm:$0xff]
        %s578 = scalar_lea.vmem [#allocation3], 65
        %v579 = vld [vmem:[%s578] ss:$2 sm:$0xff]
        %s580 = scalar_lea.vmem [#allocation3], 81
        %v581 = vld [vmem:[%s580] ss:$2 sm:$0xff]
        %s582 = scalar_lea.vmem [#allocation3], 97
        %v583 = vld [vmem:[%s582] ss:$2 sm:$0xff]
        %s584 = scalar_lea.vmem [#allocation3], 113
        %v585 = vld [vmem:[%s584] ss:$2 sm:$0xff]
        %v586 = vmax.f32 %v555, %v571
        %v587 = vmax.f32 %v557, %v573
        %v588 = vmax.f32 %v559, %v575
        %v589 = vmax.f32 %v561, %v577
        %v590 = vmax.f32 %v563, %v579
        %v591 = vmax.f32 %v565, %v581
        %v592 = vmax.f32 %v567, %v583
        %v593 = vmax.f32 %v569, %v585
        %594 = vst [vmem:[%s220] sm:$0xff] %v586
        %595 = vst [vmem:[%s220 + $0x8] sm:$0xff] %v587
        %596 = vst [vmem:[%s220 + $0x10] sm:$0xff] %v588
        %597 = vst [vmem:[%s220 + $0x18] sm:$0xff] %v589
        %598 = vst [vmem:[%s220 + $0x20] sm:$0xff] %v590
        %599 = vst [vmem:[%s220 + $0x28] sm:$0xff] %v591
        %600 = vst [vmem:[%s220 + $0x30] sm:$0xff] %v592
        %601 = vst [vmem:[%s220 + $0x38] sm:$0xff] %v593
        %s602 = sand.u32 %s137, 1
        %s603 = scalar_lea.sflag [#allocation5], %s602
        %s604 = sand.u32 %s137, 1
        %s605 = smul.addr %s604, 64
        %s606 = scalar_lea.vmem [#allocation4], %s605
        // Predicated region
        $region41: #{aaron_block_forward_nlc.1} parent=39 // pred_check
          %p607 = pneg %p147
        $region42: #{aaron_block_forward_nlc.1} parent=39 // pred_check_branch
          %609 = sbr.rel (%p607) target = $region44
        $region43: #{aaron_block_forward_nlc.1} parent=39 // pred_region
          %s610 = smul.u32 8, %s19
          %612 = vsyncadd %s603, 0
          %s613 = smul.addr %s610, 8
          %s614 = scalar_lea.hbm %s5, %s613
          %s615 = sshll.u32 %s606, 4
          %s616 = int_to_ptr.vmem [resolvable:$true] %s615
          %s617 = sshll.u32 %s614, 4
          %s618 = int_to_ptr.hbm [resolvable:$true] %s617
          %623 = dma.vmem_to_hbm [thread:$0]  %s616, 1024, %s618, %s603, 128, 128, 8
        $region44: #{aaron_block_forward_nlc.1} parent=39 // pred_fallthru
          _
      $region40: #{aaron_block_forward_nlc.1} parent=5 // pred_fallthru
        _
      %p624 = scmp.le.s32.totalorder 2, %s14
      // Predicated region
      $region45: #{aaron_block_forward_nlc.1} parent=5 // pred_check
        %p625 = pneg %p624
      $region46: #{aaron_block_forward_nlc.1} parent=5 // pred_check_branch
        %627 = sbr.rel (%p625) target = $region48
      $region47: #{aaron_block_forward_nlc.1} parent=5 // pred_region
        %s628 = ssub.s32 %s14, 2
        // Predicated region
        $region49: #{aaron_block_forward_nlc.1} parent=47 // pred_check
          %p629 = pneg %p153
        $region50: #{aaron_block_forward_nlc.1} parent=47 // pred_check_branch
          %631 = sbr.rel (%p629) target = $region52
        $region51: #{aaron_block_forward_nlc.1} parent=47 // pred_region
          %s632 = sand.u32 %s138, 1
          %s633 = scalar_lea.sflag [#allocation5], %s632
          %s634 = sand.u32 %s138, 1
          %s635 = smul.addr %s634, 64
          %s636 = scalar_lea.vmem [#allocation4], %s635
          %638 = dma.done %s633, 1024
        $region52: #{aaron_block_forward_nlc.1} parent=47 // pred_fallthru
          _
      $region48: #{aaron_block_forward_nlc.1} parent=5 // pred_fallthru
        _
    $region6: #{aaron_block_forward_nlc.1} parent=1 // loop_footer
      %s18 = sadd.s32 1, %s14
    $region7: #{aaron_block_forward_nlc.1} parent=1 // loop_footer_branch
      %13 = sbr.rel target = $region3
    $region8: #{aaron_block_forward_nlc.1} parent=1 // loop_exit
      _
    %639 = vsyncpa [#allocation5], 1
    %s640 = scalar_lea.sflag [#allocation5], 1
    %641 = vsyncpa %s640, 1

</llo_original>
